<compile_context>
chip_gen: v7x
topology: tpu7x:2x2x1
jax: 0.10.0
libtpu: 0.0.40
codegen_flags: <defaults>
</compile_context>

<pallas_src>
import jax
import jax.numpy as jnp
from jax.experimental import pallas as pl
from jax.experimental.pallas import tpu as pltpu


_LANE = 1024                   # slab lane width (multiple of 128; wide = fewer, longer DMAs)
_TARGET_TILE_BYTES = 1 << 20   # ~1 MiB per tile -> ~4 MiB resident with double-buffered in+out


def _identity_kernel(noise_ref, out_ref):
    # forward() returns the parameter unchanged: full-tile VMEM copy.
    out_ref[...] = noise_ref[...]


def unsir_noise_forward(noise: jax.Array) -> jax.Array:
    """Pallas forward pass of UNSIR_Noise: materializes the noise parameter."""
    orig_shape = noise.shape
    dtype = noise.dtype
    total = noise.size
    itemsize = jnp.dtype(dtype).itemsize

    # --- glue: flatten to a lane-dense (rows, _LANE) slab; pad the ragged tail
    # up to a full slab row so every transfer is full-lane / full-sublane.
    flat = noise.reshape(-1)
    padded_total = ((total + _LANE - 1) // _LANE) * _LANE
    if padded_total != total:
        flat = jnp.pad(flat, (0, padded_total - total))
    rows = padded_total // _LANE
    slab = flat.reshape(rows, _LANE)

    # --- tiling: ~1 MiB sublane-aligned row tiles; full-extent block for small
    # parameters (always a legal block shape).
    cap_rows = max(8, ((_TARGET_TILE_BYTES // (_LANE * itemsize)) // 8) * 8)
    tile_r = rows if rows <= cap_rows else cap_rows
    grid = (pl.cdiv(rows, tile_r),)

    out_slab = pl.pallas_call(
        _identity_kernel,
        out_shape=jax.ShapeDtypeStruct((rows, _LANE), dtype),
        grid_spec=pltpu.PrefetchScalarGridSpec(
            num_scalar_prefetch=0,
            grid=grid,
            in_specs=[pl.BlockSpec((tile_r, _LANE), lambda i: (i, 0))],
            out_specs=pl.BlockSpec((tile_r, _LANE), lambda i: (i, 0)),
        ),
        compiler_params=pltpu.CompilerParams(
            # Parallel row tiles: lets v7x shard the copy across both
            # TensorCores; no effect (and no harm) on single-TC v5e/v6e.
            dimension_semantics=("parallel",),
        ),
        cost_estimate=pl.CostEstimate(
            flops=0,
            transcendentals=0,
            bytes_accessed=2 * padded_total * itemsize,
        ),
    )(slab)

    out_flat = out_slab.reshape(-1)
    if padded_total != total:
        out_flat = out_flat[:total]
    return out_flat.reshape(orig_shape)


class UNSIRNoise:
    """JAX/Pallas analogue of the PyTorch UNSIR_Noise module."""

    def __init__(self, *dim, key=None):
        if key is None:
            key = jax.random.PRNGKey(0)
        # torch.randn(*dim) equivalent: standard-normal init, float32.
        # TODO(synk): gradient bookkeeping (requires_grad) is handled by the
        # surrounding JAX training loop, not by this module.
        self.noise = jax.random.normal(key, dim, dtype=jnp.float32)

    def forward(self):
        return unsir_noise_forward(self.noise)

    def __call__(self):
        return self.forward()


if __name__ == "__main__":
    key = jax.random.PRNGKey(0)

    # Conv-style shape (N, C, H, W) = (2, 4, 16, 16): total divisible by 1024.
    module = UNSIRNoise(2, 4, 16, 16, key=key)
    out = jax.block_until_ready(module())
    assert out.shape == (2, 4, 16, 16)
    assert out.dtype == jnp.float32
    assert bool(jnp.array_equal(out, module.noise))

    # Ragged shape exercises the pad-to-slab fallback path.
    key2 = jax.random.PRNGKey(0)
    module2 = UNSIRNoise(3, 5, 7, key=key2)
    out2 = jax.block_until_ready(module2())
    assert out2.shape == (3, 5, 7)
    assert bool(jnp.array_equal(out2, module2.noise))

    print("KERNEL_OK")
</pallas_src>

<mosaic_0001>
module attributes {stable_mosaic.version = 11 : i64} {
  func.func @_identity_kernel(%arg0: i32, %arg1: memref<2x1024xf32, #tpu.memory_space<vmem>>, %arg2: memref<2x1024xf32, #tpu.memory_space<vmem>>) attributes {dimension_semantics = [#tpu.dimension_semantics<parallel>], iteration_bounds = array<i64: 1>, scalar_prefetch = 0 : i64, scratch_operands = 0 : i64, tpu.core_type = #tpu.core_type<tc>, window_params = [{transform_indices = @transform_0, window_bounds = array<i64: 2, 1024>}, {transform_indices = @transform_1, window_bounds = array<i64: 2, 1024>}]} {
    %c0 = arith.constant 0 : index
    %c0_0 = arith.constant 0 : index
    %0 = vector.load %arg1[%c0, %c0_0] : memref<2x1024xf32, #tpu.memory_space<vmem>>, vector<2x1024xf32>
    %c0_1 = arith.constant 0 : index
    %c0_2 = arith.constant 0 : index
    %1 = vector.load %arg2[%c0_1, %c0_2] : memref<2x1024xf32, #tpu.memory_space<vmem>>, vector<2x1024xf32>
    tpu.vector_store %arg2[%c0_1, %c0_2], %0 {strides = array<i32>} : memref<2x1024xf32, #tpu.memory_space<vmem>>, vector<2x1024xf32>,
    return
  }
  func.func @transform_0(%arg0: i32) -> (i32, i32) {
    %c0_i32 = arith.constant 0 : i32
    %c0_i32_0 = arith.constant 0 : i32
    return %arg0, %c0_i32 : i32, i32
  }
  func.func @transform_1(%arg0: i32) -> (i32, i32) {
    %c0_i32 = arith.constant 0 : i32
    %c0_i32_0 = arith.constant 0 : i32
    return %arg0, %c0_i32 : i32, i32
  }
}

</mosaic_0001>

<llo_original>
// kernel: tpu_custom_call.1
$region0: #{tpu_custom_call.1}
  #allocation0 [shape = 'u32[]', space=smem, size = 0x4, offset = 0x4, fixed_abs, tag = 'smem constant byte address 0x4 - core index']
  #allocation1 [shape = 'u32[144,128]{1,0:T(1,128)}', space=vmem, size = 0x12000, scoped, tag = 'internal scratch']
  %s0 = inlined_call_operand.hbm [shape: f32[2,1024], index: 0, kind: input, shape index: {}]
  %s1 = inlined_call_operand.hbm [shape: f32[2,1024], index: 1, kind: output, shape index: {}]
  %s2 = sld [smem:[#allocation0]]
  $region18: #{tpu_custom_call.1} parent=0
    _
  %s4 = ssub.s32 1, %s2
  %s5 = scalar_select 0, %s4, %s2
  $region1: #{tpu_custom_call.1} parent=0
    #allocation2 [shape = 'u8[8192]{0}', space=vmem, size = 0x2000, scoped, tag = 'input window, operand 0, single buffered']
    #allocation3 [shape = 's32[1]{0}', space=sflag, size = 0x4, scoped, tag = 'scoped memory for tpu_custom_call.1']
    #allocation4 [shape = 's32[1]{0}', space=sflag, size = 0x4, scoped, tag = 'scoped memory for tpu_custom_call.1']
    #allocation5 [shape = 'u8[8192]{0}', space=vmem, size = 0x2000, scoped, tag = 'output window, operand 0, single buffered']
    %6 = vsyncpa [#allocation3], 0
    %7 = vsyncpa [#allocation4], 0
    // Predicated region
    $region2: #{tpu_custom_call.1} parent=1 // pred_check
      _
    $region3: #{tpu_custom_call.1} parent=1 // pred_check_branch
      %9 = sbr.rel (0) target = $region5
    $region4: #{tpu_custom_call.1} parent=1 // pred_region
      %s11 = ssub.s32 256, 256
      %12 = vsyncadd [#allocation3], %s11
      %s14 = sshll.u32 [#allocation2], 4
      %s15 = int_to_ptr.vmem [resolvable:$true] %s14
      %17 = dma.hbm_to_vmem [thread:$0]  %s0, 256, %s15, [#allocation3]
    $region5: #{tpu_custom_call.1} parent=1 // pred_fallthru
      _
    // Predicated region
    $region6: #{tpu_custom_call.1} parent=1 // pred_check
      _
    $region7: #{tpu_custom_call.1} parent=1 // pred_check_branch
      %19 = sbr.rel (0) target = $region9
    $region8: #{tpu_custom_call.1} parent=1 // pred_region
      %20 = dma.done [#allocation3], 256
    $region9: #{tpu_custom_call.1} parent=1 // pred_fallthru
      _
    %v21 = vld [vmem:[#allocation2] sm:$0xff]
    %v22 = vld [vmem:[#allocation2 + $0x8] sm:$0xff]
    %23 = vst [vmem:[#allocation5] sm:$0xff] %v21
    %24 = vst [vmem:[#allocation5 + $0x8] sm:$0xff] %v22
    // Predicated region
    $region10: #{tpu_custom_call.1} parent=1 // pred_check
      _
    $region11: #{tpu_custom_call.1} parent=1 // pred_check_branch
      %26 = sbr.rel (0) target = $region13
    $region12: #{tpu_custom_call.1} parent=1 // pred_region
      %s28 = ssub.s32 256, 256
      %29 = vsyncadd [#allocation4], %s28
      %s31 = sshll.u32 [#allocation5], 4
      %s32 = int_to_ptr.vmem [resolvable:$true] %s31
      %34 = dma.vmem_to_hbm [thread:$0]  %s32, 256, %s1, [#allocation4]
    $region13: #{tpu_custom_call.1} parent=1 // pred_fallthru
      _
    // Predicated region
    $region14: #{tpu_custom_call.1} parent=1 // pred_check
      _
    $region15: #{tpu_custom_call.1} parent=1 // pred_check_branch
      %36 = sbr.rel (0) target = $region17
    $region16: #{tpu_custom_call.1} parent=1 // pred_region
      %37 = dma.done [#allocation4], 256
    $region17: #{tpu_custom_call.1} parent=1 // pred_fallthru
      _
    %38 = vsyncpa [#allocation3], 1
    %39 = vsyncpa [#allocation4], 1

</llo_original>
